<compile_context>
chip_gen: v7x
topology: tpu7x:2x2x1
jax: 0.10.0
libtpu: 0.0.40
codegen_flags: <defaults>
</compile_context>

<pallas_src>
import jax
import jax.numpy as jnp
from jax.experimental import pallas as pl
from jax.experimental.pallas import tpu as pltpu


# Arrays at least this large (and with a leading dim >= 2) are copied by two
# grid programs so v7x's two TensorCores can each drive one DMA.
_SPLIT_MIN_BYTES = 1 * 1024 * 1024


def _emit_split_copy(idx, start, size, x_ref, o_ref, sem):
    """Grid program `idx` copies rows [start, start+size) of the leading axis."""

    @pl.when(pl.program_id(0) == idx)
    def _():
        copy = pltpu.make_async_copy(
            x_ref.at[pl.ds(start, size)],
            o_ref.at[pl.ds(start, size)],
            sem.at[idx],
        )
        copy.start()
        copy.wait()


def _make_copy_kernel(splits):
    """Kernel factory: one HBM->HBM DMA per grid program.

    `splits` is a static tuple of (start, size) pairs along the leading axis,
    one per grid program.
    """

    def kernel(x_ref, o_ref, sem):
        if len(splits) == 1:
            # Single program: one large DMA descriptor over the whole array.
            copy = pltpu.make_async_copy(x_ref, o_ref, sem)
            copy.start()
            copy.wait()
        else:
            for idx, (start, size) in enumerate(splits):
                _emit_split_copy(idx, start, size, x_ref, o_ref, sem)

    return kernel


def identity(x: jax.Array) -> jax.Array:
    """Identity forward pass (y = x), exact shape/dtype preservation."""
    if x.size == 0 or x.ndim == 0:
        # Degenerate cases (empty / rank-0): returning x is the exact identity.
        return x

    d0 = x.shape[0]
    nbytes = x.size * jnp.dtype(x.dtype).itemsize
    if d0 >= 2 and nbytes >= _SPLIT_MIN_BYTES:
        half = d0 // 2
        splits = ((0, half), (half, d0 - half))  # handles odd leading dims
    else:
        splits = ((0, d0),)
    num_programs = len(splits)
    sem_shape = () if num_programs == 1 else (num_programs,)

    return pl.pallas_call(
        _make_copy_kernel(splits),
        out_shape=jax.ShapeDtypeStruct(x.shape, x.dtype),
        grid=(num_programs,),
        in_specs=[pl.BlockSpec(memory_space=pl.ANY)],  # raw HBM ref, no auto-DMA
        out_specs=pl.BlockSpec(memory_space=pl.ANY),   # raw HBM ref, no auto-DMA
        scratch_shapes=[pltpu.SemaphoreType.DMA(sem_shape)],
        compiler_params=pltpu.CompilerParams(
            dimension_semantics=("parallel",),
        ),
    )(x)


if __name__ == "__main__":
    key = jax.random.PRNGKey(0)

    # Shape implied by the ResNet usage of Identity (N, C, H, W).
    x = jax.random.normal(key, (2, 4, 16, 16), dtype=jnp.float32)
    y = identity(x)
    jax.block_until_ready(y)
    assert y.shape == x.shape and y.dtype == x.dtype
    assert bool(jnp.all(y == x))

    # Also exercise the 2-way "parallel" split path (>= 1 MiB, odd leading
    # dim -> unequal halves).
    x2 = jax.random.normal(key, (513, 512), dtype=jnp.float32)
    y2 = identity(x2)
    jax.block_until_ready(y2)
    assert y2.shape == x2.shape and y2.dtype == x2.dtype
    assert bool(jnp.all(y2 == x2))

    print("KERNEL_OK")
</pallas_src>

<mosaic_0001>
module attributes {stable_mosaic.version = 11 : i64} {
  func.func @kernel(%arg0: i32, %arg1: memref<2x4x16x16xf32, #tpu.memory_space<any>>, %arg2: memref<2x4x16x16xf32, #tpu.memory_space<any>>, %arg3: memref<!tpu.dma_semaphore, #tpu.memory_space<semaphore_mem>>) attributes {dimension_semantics = [#tpu.dimension_semantics<parallel>], iteration_bounds = array<i64: 1>, scalar_prefetch = 0 : i64, scratch_operands = 1 : i64, tpu.core_type = #tpu.core_type<tc>, window_params = [{}, {}]} {
    tpu.enqueue_dma source(%arg1 : memref<2x4x16x16xf32, #tpu.memory_space<any>>) target(%arg2 : memref<2x4x16x16xf32, #tpu.memory_space<any>>) target_semaphore(%arg3 : memref<!tpu.dma_semaphore, #tpu.memory_space<semaphore_mem>>)
    tpu.wait_dma2 semaphore(%arg3 : memref<!tpu.dma_semaphore, #tpu.memory_space<semaphore_mem>>) src(%arg1 : memref<2x4x16x16xf32, #tpu.memory_space<any>>) dst(%arg2 : memref<2x4x16x16xf32, #tpu.memory_space<any>>)
    return
  }
}

</mosaic_0001>

<llo_original>
// kernel: tpu_custom_call.1
$region0: #{tpu_custom_call.1}
  #allocation0 [shape = 'u32[]', space=smem, size = 0x4, offset = 0x4, fixed_abs, tag = 'smem constant byte address 0x4 - core index']
  #allocation1 [shape = 'u32[144,128]{1,0:T(1,128)}', space=vmem, size = 0x12000, scoped, tag = 'internal scratch']
  #allocation2 [shape = 's32[1]{0}', space=sflag, size = 0x4, scoped, tag = 'scratch operand']
  #allocation3 [shape = 's32[]', space=sflag, size = 0x4, offset = 0, fixed_abs, tag = 'sflag constant byte address 0x0 - dummy sync flag']
  #allocation4 [shape = 'u32[0]{0}', space=smem, size = 0, offset = 0, fixed_abs, tag = 'smem constant byte address 0x0 - null']
  %s0 = inlined_call_operand.hbm [shape: f32[2,4,16,16], index: 0, kind: input, shape index: {}]
  %s1 = inlined_call_operand.hbm [shape: f32[2,4,16,16], index: 1, kind: output, shape index: {}]
  %s2 = sld [smem:[#allocation0]]
  $region2: #{tpu_custom_call.1} parent=0
    _
  %s4 = ssub.s32 1, %s2
  %s5 = scalar_select 0, %s4, %s2
  %s7 = sshll.u32 1, 14
  %s8 = sxor.u32 4294967295, %s7
  %s11 = sshll.u32 3, 24
  %s12 = sxor.u32 4294967295, %s11
  %s13 = sand.u32 0, %s12
  %s15 = sor.u32 %s13, 0
  %18 = dma.general %s0, 2048, %s1, [#allocation2], [#allocation3], [#allocation4], %s15, 0
  %s19 = smul.u32 2, 4
  %s20 = smul.u32 %s19, 16
  %s21 = smul.u32 %s20, 1
  %s22 = sshll.u32 %s21, 4
  %23 = dma.done [#allocation2], %s22
  %24 = vsyncmov [#allocation2]
  %s25 = vpop.sfrf %24
  %p26 = scmp.eq.s32.totalorder %s25, 0
  %p27 = pneg %p26
  %29 = shalt.err (%p27)

</llo_original>
